<compile_context>
chip_gen: v5e
topology: v5e:2x2
jax: 0.10.0
libtpu: 0.0.40
codegen_flags: <defaults>
</compile_context>

<pallas_src>
import functools

import jax
import jax.numpy as jnp
from jax import lax
from jax.experimental import pallas as pl
from jax.experimental.pallas import tpu as pltpu


def _round_up(x, m):
    return ((x + m - 1) // m) * m


def _channel_tiles(C):
    """Channel tile sizes that divide C exactly (full C first, then
    multiple-of-8 divisors, descending), so the channel sum never reads a
    ragged / garbage-filled channel block."""
    return [C] + [d for d in range(8 * (C // 8), 0, -8) if d < C and C % d == 0]


def _vmem_budget():
    """Generation-aware (tile_budget, vmem_limit) in bytes."""
    try:
        cap = pltpu.get_tpu_info().vmem_capacity_bytes
    except Exception:
        cap = 64 * 1024 * 1024                      # conservative (v7x per-TC)
    if cap >= 100 * 1024 * 1024:                    # v5e / v6e class (128 MiB)
        return int(cap * 0.50), int(cap * 0.75)
    return int(cap * 0.35), int(cap * 0.60)         # v7x class (64 MiB)


# ----------------------------------------------------------------------------
# Pallas kernel: GradCAM saliency reduction
# ----------------------------------------------------------------------------
def _gradcam_saliency_kernel(acts_ref, grads_ref, out_ref, *,
                             inv_hw, do_relu, n_c_steps):
    # acts_ref / grads_ref: (TB, TC, HW) tile in the model's native dtype.
    # out_ref:              (TB, 1, HW) f32; doubles as the channel accumulator.
    a = acts_ref[...]

    # average_gradients = grads.mean(-1).mean(-1): per-channel spatial mean.
    # f32 accumulation WITHOUT materialising a full f32 copy of the grads tile.
    avg = jnp.sum(grads_ref[...], axis=-1, dtype=jnp.float32) * inv_hw  # (TB, TC)

    # saliency[b, s] = sum_c avg[b, c] * acts[b, c, s]: batched matvec on the
    # MXU with f32 accumulation.  avg stays f32 (no bf16 downcast); acts are
    # upcast per channel tile -- the MXU is essentially idle at M=1, so the
    # extra precision is free (and the temp is counted in the VMEM budget).
    sal = jnp.einsum("bmc,bcs->bms", avg[:, None, :], a.astype(jnp.float32),
                     preferred_element_type=jnp.float32)        # (TB, 1, HW)

    if n_c_steps == 1:
        if do_relu:
            sal = jnp.maximum(sal, 0.0)
        out_ref[...] = sal.astype(out_ref.dtype)
    else:
        k = pl.program_id(1)

        @pl.when(k == 0)
        def _():
            out_ref[...] = jnp.zeros_like(out_ref)

        out_ref[...] += sal

        if do_relu:
            @pl.when(k == n_c_steps - 1)
            def _():
                out_ref[...] = jnp.maximum(out_ref[...], 0.0)


def gradcam_saliency(acts_nchw, grads_nchw, *, do_relu=False,
                     max_rows_per_step=None, max_channels_per_step=None):
    """acts/grads: [B, C, H, W] (any float dtype) -> saliency [B, H, W] f32."""
    B, C, H, W = acts_nchw.shape
    HW = H * W

    # Collapse spatial dims so the lane axis sees HW contiguous elements.
    # This is a free row-major collapse; there is NO jnp.pad of HW or B.
    acts2 = acts_nchw.reshape(B, C, HW)
    grads2 = grads_nchw.reshape(B, C, HW)

    tile_budget, vmem_limit = _vmem_budget()
    HW_v = _round_up(HW, 128)        # lane-padded VMEM footprint (data unpadded)
    in_itemsize = acts2.dtype.itemsize + grads2.dtype.itemsize

    def step_bytes(tb, tc):
        # double-buffered inputs + in-kernel f32 temporaries (acts upcast for
        # the MXU matvec, grads f32 reduce) + double-buffered, sublane-padded
        # f32 output tile.
        return tb * tc * HW_v * (2 * in_itemsize + 8) + tb * 2 * 8 * HW_v * 4

    # Channels per step: whole C when it fits, otherwise the largest exact
    # divisor that fits (C becomes a reduction grid axis for huge layers).
    tiles = _channel_tiles(C)
    if max_channels_per_step is not None:
        tiles = [t for t in tiles if t <= max_channels_per_step] or tiles[-1:]
    TC = tiles[-1]                       # smallest divisor: best-effort fallback
    for t in tiles:
        if step_bytes(1, t) <= tile_budget:
            TC = t
            break

    # Rows (batch elements) per step: as many as fit the budget, but keep
    # >= ~4 batch grid steps (>= 2 so both v7x TensorCores get work and the
    # BlockSpec pipeline reaches steady state).  No cliff down to TB=1.
    tb_fit = max(1, tile_budget // step_bytes(1, TC))
    TB = max(1, min(tb_fit, pl.cdiv(B, 4), B))
    if max_rows_per_step is not None:
        TB = max(1, min(TB, max_rows_per_step))

    n_b = pl.cdiv(B, TB)
    n_c = pl.cdiv(C, TC)                 # TC divides C exactly -> no ragged sum

    kernel = functools.partial(_gradcam_saliency_kernel, inv_hw=1.0 / HW,
                               do_relu=do_relu, n_c_steps=n_c)
    out = pl.pallas_call(
        kernel,
        out_shape=jax.ShapeDtypeStruct((B, 1, HW), jnp.float32),
        grid=(n_b, n_c),
        in_specs=[
            pl.BlockSpec((TB, TC, HW), lambda b, k: (b, k, 0)),
            pl.BlockSpec((TB, TC, HW), lambda b, k: (b, k, 0)),
        ],
        out_specs=pl.BlockSpec((TB, 1, HW), lambda b, k: (b, 0, 0)),
        compiler_params=pltpu.CompilerParams(
            dimension_semantics=("parallel", "arbitrary"),
            vmem_limit_bytes=vmem_limit),
    )(acts2, grads2)

    return out.reshape(B, H, W)


# ----------------------------------------------------------------------------
# Plain-JAX glue: tiny model (target conv layer + GAP + FC) and the backward
# that the PyTorch full_backward_hook would capture (d sum(top-logits)/d acts).
# ----------------------------------------------------------------------------
def _target_layer(x, w_conv, b_conv):
    # Mirrors nn.Conv2d(C_in, C_feat, kernel_size=3, padding=1), NCHW.
    y = lax.conv_general_dilated(
        x, w_conv, window_strides=(1, 1), padding="SAME",
        dimension_numbers=("NCHW", "OIHW", "NCHW"))
    return y + b_conv[None, :, None, None]


def gradcam_forward(x, w_conv, b_conv, w_fc, b_fc, *, do_relu=False):
    # --- self.model(x); act_hook captures acts = target_layer output ---
    acts = _target_layer(x, w_conv, b_conv)              # [B, C_feat, H, W]

    def head_fn(a):
        feats = jnp.mean(a, axis=(2, 3))                 # global average pool
        return feats @ w_fc.T + b_fc                     # logits [B, n_cls]

    preds = head_fn(acts)
    idxs = jnp.argmax(preds, axis=1)                     # idxs treated as const
    b_range = jnp.arange(preds.shape[0])

    # torch.sum(preds[arange, idxs]).backward(); grad_hook captures grads
    grads = jax.grad(lambda a: jnp.sum(head_fn(a)[b_range, idxs]))(acts)

    # --- the module's own compute: Pallas kernel (native dtype in) ---
    saliency = gradcam_saliency(acts, grads, do_relu=do_relu)
    return saliency, acts, grads


# ----------------------------------------------------------------------------
if __name__ == "__main__":
    key = jax.random.PRNGKey(0)
    kx, kw1, kb1, kw2, kb2, ka, kg, ka3, kg3 = jax.random.split(key, 9)

    # --- test 1: full GradCAM forward (f32, 16x16 feature map, B=2) ---------
    B, C_in, H, W = 2, 4, 16, 16
    C_feat, n_cls = 8, 10

    x = jax.random.normal(kx, (B, C_in, H, W), dtype=jnp.float32)
    w_conv = jax.random.normal(kw1, (C_feat, C_in, 3, 3), dtype=jnp.float32) * 0.1
    b_conv = jax.random.normal(kb1, (C_feat,), dtype=jnp.float32) * 0.1
    w_fc = jax.random.normal(kw2, (n_cls, C_feat), dtype=jnp.float32) * 0.1
    b_fc = jax.random.normal(kb2, (n_cls,), dtype=jnp.float32) * 0.1

    fwd = jax.jit(functools.partial(gradcam_forward, do_relu=False))
    saliency, acts, grads = fwd(x, w_conv, b_conv, w_fc, b_fc)
    saliency = jax.block_until_ready(saliency)

    avg_grad = grads.mean(axis=(-1, -2), keepdims=True)   # [B, C, 1, 1]
    ref = jnp.sum(acts * avg_grad, axis=1)                # [B, H, W]
    assert saliency.shape == (B, H, W)
    assert jnp.allclose(saliency, ref, atol=1e-5, rtol=1e-5)

    # --- test 2: bf16 inputs, non-128-aligned spatial (7x7, HW=49, NO pad),
    #             multi-step batch grid, do_relu=True ------------------------
    B2, C2, H2, W2 = 20, 16, 7, 7
    a2 = jax.random.normal(ka, (B2, C2, H2, W2), jnp.float32).astype(jnp.bfloat16)
    g2 = jax.random.normal(kg, (B2, C2, H2, W2), jnp.float32).astype(jnp.bfloat16)

    sal2 = jax.block_until_ready(
        gradcam_saliency(a2, g2, do_relu=True, max_rows_per_step=8))

    a2f, g2f = a2.astype(jnp.float32), g2.astype(jnp.float32)
    avg2 = g2f.mean(axis=(-1, -2), keepdims=True)
    ref2 = jnp.maximum(jnp.sum(a2f * avg2, axis=1), 0.0)
    assert sal2.shape == (B2, H2, W2)
    # avg stays f32 through the matvec now -> much tighter than the old 5e-2.
    assert jnp.allclose(sal2, ref2, atol=1e-3, rtol=1e-3)

    # --- test 3: channel-split reduction path (n_c > 1) + ragged batch ------
    B3, C3, H3, W3 = 7, 32, 5, 5
    a3 = jax.random.normal(ka3, (B3, C3, H3, W3), dtype=jnp.float32)
    g3 = jax.random.normal(kg3, (B3, C3, H3, W3), dtype=jnp.float32)

    sal3 = jax.block_until_ready(
        gradcam_saliency(a3, g3, do_relu=True,
                         max_rows_per_step=2, max_channels_per_step=8))

    avg3 = g3.mean(axis=(-1, -2), keepdims=True)
    ref3 = jnp.maximum(jnp.sum(a3 * avg3, axis=1), 0.0)
    assert sal3.shape == (B3, H3, W3)
    assert jnp.allclose(sal3, ref3, atol=1e-5, rtol=1e-5)

    # TODO(synk): .cpu().detach() host transfer, return_feature plumbing, and
    # the nn.Module hook registration/removal have no in-kernel equivalent;
    # callers get a device array back.
    print("KERNEL_OK")
</pallas_src>

<mosaic_0001>
module attributes {stable_mosaic.version = 11 : i64} {
  func.func @_gradcam_saliency_kernel(%arg0: i32, %arg1: i32, %arg2: memref<1x8x256xf32, #tpu.memory_space<vmem>>, %arg3: memref<1x8x256xf32, #tpu.memory_space<vmem>>, %arg4: memref<1x1x256xf32, #tpu.memory_space<vmem>>) attributes {dimension_semantics = [#tpu.dimension_semantics<parallel>, #tpu.dimension_semantics<arbitrary>], iteration_bounds = array<i64: 2, 1>, scalar_prefetch = 0 : i64, scratch_operands = 0 : i64, tpu.core_type = #tpu.core_type<tc>, window_params = [{transform_indices = @transform_0, window_bounds = array<i64: 1, 8, 256>}, {transform_indices = @transform_1, window_bounds = array<i64: 1, 8, 256>}, {transform_indices = @transform_2, window_bounds = array<i64: 1, 1, 256>}]} {
    %c0 = arith.constant 0 : index
    %c0_0 = arith.constant 0 : index
    %c0_1 = arith.constant 0 : index
    %0 = vector.load %arg2[%c0, %c0_0, %c0_1] : memref<1x8x256xf32, #tpu.memory_space<vmem>>, vector<1x8x256xf32>
    %c0_2 = arith.constant 0 : index
    %c0_3 = arith.constant 0 : index
    %c0_4 = arith.constant 0 : index
    %1 = vector.load %arg3[%c0_2, %c0_3, %c0_4] : memref<1x8x256xf32, #tpu.memory_space<vmem>>, vector<1x8x256xf32>
    %cst = arith.constant dense<0.000000e+00> : vector<1x8xf32>
    %2 = vector.multi_reduction <add>, %1, %cst [2] : vector<1x8x256xf32> to vector<1x8xf32>
    %cst_5 = arith.constant 3.906250e-03 : f32
    %3 = vector.broadcast %cst_5 : f32 to vector<1x8xf32>
    %4 = arith.mulf %2, %3 : vector<1x8xf32>
    %5 = vector.shape_cast %4 : vector<1x8xf32> to vector<1x1x8xf32>
    "tpu.trace_start"() <{level = 10 : i32, message = "bmc,bcs->bms"}> : () -> ()
    %cst_6 = arith.constant dense<0.000000e+00> : vector<1x1x256xf32>
    %6 = tpu.matmul %5, %0, %cst_6 {dimension_numbers = #tpu.dot_dimension_numbers<[2], [1], [1], [2], [0, 0, 0, 1, 1, 2], [0], [0]>} : vector<1x1x8xf32>, vector<1x8x256xf32>, vector<1x1x256xf32> -> vector<1x1x256xf32>
    "tpu.trace_stop"() : () -> ()
    %c0_7 = arith.constant 0 : index
    %c0_8 = arith.constant 0 : index
    %c0_9 = arith.constant 0 : index
    %7 = vector.load %arg4[%c0_7, %c0_8, %c0_9] : memref<1x1x256xf32, #tpu.memory_space<vmem>>, vector<1x1x256xf32>
    tpu.vector_store %arg4[%c0_7, %c0_8, %c0_9], %6 {strides = array<i32>} : memref<1x1x256xf32, #tpu.memory_space<vmem>>, vector<1x1x256xf32>,
    return
  }
  func.func @transform_0(%arg0: i32, %arg1: i32) -> (i32, i32, i32) {
    %c0_i32 = arith.constant 0 : i32
    %c0_i32_0 = arith.constant 0 : i32
    return %arg0, %arg1, %c0_i32 : i32, i32, i32
  }
  func.func @transform_1(%arg0: i32, %arg1: i32) -> (i32, i32, i32) {
    %c0_i32 = arith.constant 0 : i32
    %c0_i32_0 = arith.constant 0 : i32
    return %arg0, %arg1, %c0_i32 : i32, i32, i32
  }
  func.func @transform_2(%arg0: i32, %arg1: i32) -> (i32, i32, i32) {
    %c0_i32 = arith.constant 0 : i32
    %c0_i32_0 = arith.constant 0 : i32
    %c0_i32_1 = arith.constant 0 : i32
    return %arg0, %c0_i32, %c0_i32_0 : i32, i32, i32
  }
}

</mosaic_0001>

<llo_original>
// kernel: gradcam_forward.1
$region0: #{gradcam_forward.1}
  #allocation0 [shape = 'u32[]', space=smem, size = 0x4, offset = 0x4, fixed_abs, tag = 'smem constant byte address 0x4 - core index']
  #allocation1 [shape = 'u32[72,128]{1,0:T(1,128)}', space=vmem, size = 0x9000, scoped, tag = 'internal scratch']
  %s0 = inlined_call_operand.vmem [shape: f32[2,8,256], index: 0, kind: input, shape index: {}]
  %s1 = inlined_call_operand.vmem [shape: f32[2,8,256], index: 1, kind: input, shape index: {}]
  %s2 = inlined_call_operand.vmem [shape: f32[2,1,256], index: 2, kind: output, shape index: {}]
  %s3 = sld [smem:[#allocation0]]
  $region41: #{gradcam_forward.1} parent=0
    _
  %s5 = ssub.s32 1, %s3
  %s6 = scalar_select 0, %s5, %s3
  loop: start=0, step=1, limit=4
  $region2: #{gradcam_forward.1} parent=0 // loop_pre_header
    _
  $region3: #{gradcam_forward.1} parent=0 // loop_header
    %s8 = sphi 0, %s12
    %p9 = scmp.ge.s32.totalorder %s8, 4
    %s15 = sphi 0, %s27
    %s16 = sphi 0, %s23
    %s17 = sphi 0, %s15
    %s18 = sphi 0, %s16
    %s19 = sphi 0, %s17
    %s20 = sphi 0, %s18
    %s32 = sphi 0, %s34
    %s35 = sphi 0, %s32
    %s36 = sphi 0, %s35
    %s52 = sphi 0, %s36
    %s60 = sphi 0, %s62
    %s63 = sphi 0, %s60
    %s64 = sphi 0, %s63
    %s80 = sphi 0, %s64
    %s86 = sphi 0, %s88
    %s89 = sphi 0, %s86
    %s90 = sphi 0, %s89
    %s106 = sphi 0, %s90
  $region4: #{gradcam_forward.1} parent=0 // loop_header_branch
    %11 = sbr.rel (%p9) target = $region8
  $region5: #{gradcam_forward.1} parent=0 // loop_body
    %s13 = ssub.s32 %s8, 1
    %s14 = ssub.s32 %s8, 2
    %s21 = sadd.s32 1, %s16
    %p22 = scmp.ge.s32.totalorder %s21, 1
    %s23 = scalar_select %p22, 0, %s21
    %s24 = sadd.s32 1, %s15
    %s25 = scalar_select %p22, %s24, %s15
    %p26 = scmp.ge.s32.totalorder %s25, 2
    %s27 = scalar_select %p26, 0, %s25
    %s28 = ssub.s32 %s15, %s27
    %s29 = ssub.s32 %s16, %s23
    %s30 = sor.u32 %s28, %s29
    %p31 = scmp.eq.s32.totalorder %s30, 0
    %s33 = sadd.s32 %s32, 1
    %s34 = scalar_select %p31, %s32, %s33
    %p37 = pneg %p31
    %p38 = scmp.eq.s32.totalorder %s8, 1
    %p39 = por %p37, %p38
    %p40 = scmp.ne.s32.totalorder %s32, %s35
    %p41 = scmp.eq.s32.totalorder %s8, 0
    %p42 = por %p40, %p41
    %p43 = scmp.ne.s32.totalorder %s32, %s35
    %p44 = scmp.eq.s32.totalorder %s13, 1
    %p45 = por %p43, %p44
    %p46 = scmp.ne.s32.totalorder %s35, %s36
    %p47 = scmp.eq.s32.totalorder %s13, 0
    %p48 = por %p46, %p47
    %p49 = scmp.ne.s32.totalorder %s35, %s36
    %p50 = scmp.eq.s32.totalorder %s14, 1
    %p51 = por %p49, %p50
    %p53 = scmp.ne.s32.totalorder %s36, %s52
    %p54 = scmp.eq.s32.totalorder %s14, 0
    %p55 = por %p53, %p54
    %s56 = ssub.s32 %s15, %s27
    %s57 = ssub.s32 %s16, %s23
    %s58 = sor.u32 %s56, %s57
    %p59 = scmp.eq.s32.totalorder %s58, 0
    %s61 = sadd.s32 %s60, 1
    %s62 = scalar_select %p59, %s60, %s61
    %p65 = pneg %p59
    %p66 = scmp.eq.s32.totalorder %s8, 1
    %p67 = por %p65, %p66
    %p68 = scmp.ne.s32.totalorder %s60, %s63
    %p69 = scmp.eq.s32.totalorder %s8, 0
    %p70 = por %p68, %p69
    %p71 = scmp.ne.s32.totalorder %s60, %s63
    %p72 = scmp.eq.s32.totalorder %s13, 1
    %p73 = por %p71, %p72
    %p74 = scmp.ne.s32.totalorder %s63, %s64
    %p75 = scmp.eq.s32.totalorder %s13, 0
    %p76 = por %p74, %p75
    %p77 = scmp.ne.s32.totalorder %s63, %s64
    %p78 = scmp.eq.s32.totalorder %s14, 1
    %p79 = por %p77, %p78
    %p81 = scmp.ne.s32.totalorder %s64, %s80
    %p82 = scmp.eq.s32.totalorder %s14, 0
    %p83 = por %p81, %p82
    %s84 = ssub.s32 %s15, %s27
    %p85 = scmp.eq.s32.totalorder %s84, 0
    %s87 = sadd.s32 %s86, 1
    %s88 = scalar_select %p85, %s86, %s87
    %p91 = pneg %p85
    %p92 = scmp.eq.s32.totalorder %s8, 1
    %p93 = por %p91, %p92
    %p94 = scmp.ne.s32.totalorder %s86, %s89
    %p95 = scmp.eq.s32.totalorder %s8, 0
    %p96 = por %p94, %p95
    %p97 = scmp.ne.s32.totalorder %s86, %s89
    %p98 = scmp.eq.s32.totalorder %s13, 1
    %p99 = por %p97, %p98
    %p100 = scmp.ne.s32.totalorder %s89, %s90
    %p101 = scmp.eq.s32.totalorder %s13, 0
    %p102 = por %p100, %p101
    %p103 = scmp.ne.s32.totalorder %s89, %s90
    %p104 = scmp.eq.s32.totalorder %s14, 1
    %p105 = por %p103, %p104
    %p107 = scmp.ne.s32.totalorder %s90, %s106
    %p108 = scmp.eq.s32.totalorder %s14, 0
    %p109 = por %p107, %p108
    %p110 = scmp.le.s32.totalorder 1, %s8
    %p111 = scmp.lt.s32.totalorder %s8, 3
    %p112 = pnand %p110, %p111
    %p113 = pneg %p112
    // Predicated region
    $region9: #{gradcam_forward.1} parent=5 // pred_check
      _
    $region10: #{gradcam_forward.1} parent=5 // pred_check_branch
      %115 = sbr.rel (%p112) target = $region12
    $region11: #{gradcam_forward.1} parent=5 // pred_region
      %s116 = ssub.s32 %s8, 1
    $region12: #{gradcam_forward.1} parent=5 // pred_fallthru
      _
    %p117 = scmp.lt.s32.totalorder %s8, 2
    // Predicated region
    $region13: #{gradcam_forward.1} parent=5 // pred_check
      %p118 = pneg %p117
    $region14: #{gradcam_forward.1} parent=5 // pred_check_branch
      %120 = sbr.rel (%p118) target = $region16
    $region15: #{gradcam_forward.1} parent=5 // pred_region
      // Predicated region
      $region17: #{gradcam_forward.1} parent=15 // pred_check
        %p121 = pneg %p42
      $region18: #{gradcam_forward.1} parent=15 // pred_check_branch
        %123 = sbr.rel (%p121) target = $region20
      $region19: #{gradcam_forward.1} parent=15 // pred_region
        %p124 = scmp.lt.s32.totalorder %s15, 1
        %s125 = scalar_select %p124, %s15, 1
        %p126 = scmp.lt.s32.totalorder %s16, 0
        %s127 = scalar_select %p126, %s16, 0
        %s128 = smul.addr %s127, 2
        %s129 = smul.addr %s125, 2
        %s130 = sadd.s32 %s128, %s129
        %s131 = smul.addr %s130, 8
        %s132 = scalar_lea.vmem %s0, %s131
      $region20: #{gradcam_forward.1} parent=15 // pred_fallthru
        _
      // Predicated region
      $region21: #{gradcam_forward.1} parent=15 // pred_check
        %p133 = pneg %p70
      $region22: #{gradcam_forward.1} parent=15 // pred_check_branch
        %135 = sbr.rel (%p133) target = $region24
      $region23: #{gradcam_forward.1} parent=15 // pred_region
        %p136 = scmp.lt.s32.totalorder %s15, 1
        %s137 = scalar_select %p136, %s15, 1
        %p138 = scmp.lt.s32.totalorder %s16, 0
        %s139 = scalar_select %p138, %s16, 0
        %s140 = smul.addr %s139, 2
        %s141 = smul.addr %s137, 2
        %s142 = sadd.s32 %s140, %s141
        %s143 = smul.addr %s142, 8
        %s144 = scalar_lea.vmem %s1, %s143
      $region24: #{gradcam_forward.1} parent=15 // pred_fallthru
        _
    $region16: #{gradcam_forward.1} parent=5 // pred_fallthru
      _
    %p145 = scmp.le.s32.totalorder 1, %s8
    %p146 = scmp.lt.s32.totalorder %s8, 3
    %p147 = pnand %p145, %p146
    %p148 = pneg %p147
    // Predicated region
    $region25: #{gradcam_forward.1} parent=5 // pred_check
      _
    $region26: #{gradcam_forward.1} parent=5 // pred_check_branch
      %150 = sbr.rel (%p147) target = $region28
    $region27: #{gradcam_forward.1} parent=5 // pred_region
      %s151 = ssub.s32 %s8, 1
      %p152 = scmp.lt.s32.totalorder %s17, 1
      %s153 = scalar_select %p152, %s17, 1
      %p154 = scmp.lt.s32.totalorder %s18, 0
      %s155 = scalar_select %p154, %s18, 0
      %s156 = smul.addr %s155, 2
      %s157 = smul.addr %s153, 2
      %s158 = sadd.s32 %s156, %s157
      %s159 = smul.addr %s158, 8
      %s160 = scalar_lea.vmem %s0, %s159
      %p161 = pneg %p48
      %p162 = pneg %p45
      %p163 = scmp.lt.s32.totalorder %s17, 1
      %s164 = scalar_select %p163, %s17, 1
      %p165 = scmp.lt.s32.totalorder %s18, 0
      %s166 = scalar_select %p165, %s18, 0
      %s167 = smul.addr %s166, 2
      %s168 = smul.addr %s164, 2
      %s169 = sadd.s32 %s167, %s168
      %s170 = smul.addr %s169, 8
      %s171 = scalar_lea.vmem %s1, %s170
      %p172 = pneg %p76
      %p173 = pneg %p73
      %p174 = pneg %p102
      %p175 = pneg %p99
      %p176 = scmp.lt.s32.totalorder %s17, 1
      %s177 = scalar_select %p176, %s17, 1
      %s178 = smul.addr %s177, 2
      %s179 = scalar_lea.vmem %s2, %s178
      %p180 = scmp.lt.s32.totalorder %s17, 1
      %s181 = scalar_select %p180, %s17, 1
      %p182 = scmp.lt.s32.totalorder %s18, 0
      %s183 = scalar_select %p182, %s18, 0
      %s184 = smul.addr %s183, 2
      %s185 = smul.addr %s181, 2
      %s186 = sadd.s32 %s184, %s185
      %s187 = smul.addr %s186, 8
      %s188 = scalar_lea.vmem %s0, %s187
      %p189 = scmp.lt.s32.totalorder %s17, 1
      %s190 = scalar_select %p189, %s17, 1
      %p191 = scmp.lt.s32.totalorder %s18, 0
      %s192 = scalar_select %p191, %s18, 0
      %s193 = smul.addr %s192, 2
      %s194 = smul.addr %s190, 2
      %s195 = sadd.s32 %s193, %s194
      %s196 = smul.addr %s195, 8
      %s197 = scalar_lea.vmem %s1, %s196
      %p198 = scmp.lt.s32.totalorder %s17, 1
      %s199 = scalar_select %p198, %s17, 1
      %s200 = smul.addr %s199, 2
      %s201 = scalar_lea.vmem %s2, %s200
      %v202 = vld [vmem:[%s188] sm:$0xff]
      %v203 = vld [vmem:[%s188 + $0x8] sm:$0xff]
      %v204 = vld [vmem:[%s197] sm:$0xff]
      %v205 = vld [vmem:[%s197 + $0x8] sm:$0xff]
      %v206 = vadd.f32 %v204, %v205
      %207 = vadd.xlane.f32.xlu0 %v206
      %v208 = vpop.xlane.xlu0 %207
      %v209 = vmul.f32 %v208, 0.00390625
      %v211 = vlaneseq
      %v212 = vand.u32 %v211, 127
      %v213 = vperm.slane %v209, %v212
      %vm214 = vcmask 64512
      %v215 = vsel %vm214, %v213, 0
      %217 = vmatpush.msra.mxu0 0.0
      %218 = vmatpush.msra.mxu0 0.0
      %219 = vmatpush.msra.mxu0 0.0
      %220 = vmatpush.msra.mxu0 0.0
      %221 = vmatpush.msra.mxu0 0.0
      %222 = vmatpush.msra.mxu0 0.0
      %223 = vmatpush.msra.mxu0 0.0
      %224 = vmatpush.msra.mxu0 0.0
      %225 = vmatpush.msra.mxu0 0.0
      %226 = vmatpush.msra.mxu0 0.0
      %227 = vmatpush.msra.mxu0 0.0
      %228 = vmatpush.msra.mxu0 0.0
      %229 = vmatpush.msra.mxu0 0.0
      %230 = vmatpush.msra.mxu0 0.0
      %231 = vmatpush.msra.mxu0 0.0
      %232 = vmatpush.msra.mxu0 %v202
      %233 = vmatmul.f32.gmra.mxu0 %v215
      %v234 = vpop.f32.mrf.mxu0
      %v235 = vadd.f32 0.0, %v234
      %236 = vdwg.mxu0
      %237 = vmatpush.msra.mxu0 0.0
      %238 = vmatpush.msra.mxu0 0.0
      %239 = vmatpush.msra.mxu0 0.0
      %240 = vmatpush.msra.mxu0 0.0
      %241 = vmatpush.msra.mxu0 0.0
      %242 = vmatpush.msra.mxu0 0.0
      %243 = vmatpush.msra.mxu0 0.0
      %244 = vmatpush.msra.mxu0 0.0
      %245 = vmatpush.msra.mxu0 0.0
      %246 = vmatpush.msra.mxu0 0.0
      %247 = vmatpush.msra.mxu0 0.0
      %248 = vmatpush.msra.mxu0 0.0
      %249 = vmatpush.msra.mxu0 0.0
      %250 = vmatpush.msra.mxu0 0.0
      %251 = vmatpush.msra.mxu0 0.0
      %252 = vmatpush.msra.mxu0 %v203
      %253 = vmatmul.f32.gmra.mxu0 %v215
      %v254 = vpop.f32.mrf.mxu0
      %v255 = vadd.f32 0.0, %v254
      %256 = vdwg.mxu0
      %v259 = vrot.slane %v255, 7
      %vm260 = vcmask 1040384
      %v261 = vsel %vm260, %v235, %v259
      %v263 = vlaneseq
      %vm264 = vcmp.ge.s32.totalorder %v263, 0
      %vm265 = vcmp.lt.s32.totalorder %v263, 256
      %vm266 = vmand %vm264, %vm265
      %267 = vst.msk [vmem:[%s201] sm:$0x3] %vm266, %v261
      %p268 = scmp.lt.s32.totalorder %s17, 1
      %s269 = scalar_select %p268, %s17, 1
      %s270 = smul.addr %s269, 2
      %s271 = scalar_lea.vmem %s2, %s270
      // Predicated region
      $region29: #{gradcam_forward.1} parent=27 // pred_check
        %p272 = pneg %p99
      $region30: #{gradcam_forward.1} parent=27 // pred_check_branch
        %274 = sbr.rel (%p272) target = $region32
      $region31: #{gradcam_forward.1} parent=27 // pred_region
        _
      $region32: #{gradcam_forward.1} parent=27 // pred_fallthru
        _
    $region28: #{gradcam_forward.1} parent=5 // pred_fallthru
      _
    %p275 = scmp.le.s32.totalorder 2, %s8
    // Predicated region
    $region33: #{gradcam_forward.1} parent=5 // pred_check
      %p276 = pneg %p275
    $region34: #{gradcam_forward.1} parent=5 // pred_check_branch
      %278 = sbr.rel (%p276) target = $region36
    $region35: #{gradcam_forward.1} parent=5 // pred_region
      %s279 = ssub.s32 %s8, 2
      // Predicated region
      $region37: #{gradcam_forward.1} parent=35 // pred_check
        %p280 = pneg %p105
      $region38: #{gradcam_forward.1} parent=35 // pred_check_branch
        %282 = sbr.rel (%p280) target = $region40
      $region39: #{gradcam_forward.1} parent=35 // pred_region
        %p283 = scmp.lt.s32.totalorder %s19, 1
        %s284 = scalar_select %p283, %s19, 1
        %s285 = smul.addr %s284, 2
        %s286 = scalar_lea.vmem %s2, %s285
      $region40: #{gradcam_forward.1} parent=35 // pred_fallthru
        _
    $region36: #{gradcam_forward.1} parent=5 // pred_fallthru
      _
  $region6: #{gradcam_forward.1} parent=0 // loop_footer
    %s12 = sadd.s32 1, %s8
  $region7: #{gradcam_forward.1} parent=0 // loop_footer_branch
    %7 = sbr.rel target = $region3
  $region8: #{gradcam_forward.1} parent=0 // loop_exit
    _

</llo_original>
